<compile_context>
chip_gen: v6e
topology: v6e:2x2x1
jax: 0.10.0
libtpu: 0.0.40
codegen_flags: <defaults>
</compile_context>

<pallas_src>
import functools
import math

import jax
import jax.numpy as jnp
from jax.experimental import pallas as pl
from jax.experimental.pallas import tpu as pltpu

_LANE = 128
_MIN_GRID_STEPS = 4                    # keep pipelining + v7x 2-TC sharding alive
_MAX_UNROLL_BATCH = 32                 # max static unroll for the row-major path
_VMEM_TILE_BUDGET_BYTES = 24 * 1024 * 1024   # all double-buffered blocks (padding-aware)
_VMEM_LIMIT_BYTES = 32 * 1024 * 1024         # explicit scoped-VMEM limit (< 64 MiB v7x physical)


def _round_up(x: int, m: int) -> int:
    return ((x + m - 1) // m) * m


def _sublane_tile(dtype) -> int:
    # VMEM is allocated in (sublane, 128) tiles; sub-32-bit dtypes pack sublanes.
    return max(8, 32 // jnp.dtype(dtype).itemsize)


def _pick_row_tile(total_rows: int, padded_bytes_per_row: int, sub: int) -> int:
    """Row tile: multiple of `sub` (or full extent), within the VMEM budget,
    and small enough to give >= _MIN_GRID_STEPS grid steps when possible."""
    budget_rows = (_VMEM_TILE_BUDGET_BYTES // max(padded_bytes_per_row, 1)) // sub * sub
    budget_rows = max(sub, budget_rows)
    depth_rows = max(sub, _round_up(pl.cdiv(total_rows, _MIN_GRID_STEPS), sub))
    tr = min(budget_rows, depth_rows)
    if tr >= total_rows:
        return total_rows              # single full-extent block (always legal)
    return int(tr)


# ----------------------------------------------------------------------------- kernels
def _add_kernel(x_ref, pe_ref, o_ref):
    # Same-shape dense elementwise add: x/pe/o are (tr, C).
    o_ref[...] = x_ref[...] + pe_ref[...]


def _add_bcast_sublane_kernel(x_ref, pe_ref, o_ref):
    # x/o: (ts, B, D); pe: (ts, D).  Broadcast pe over the batch (sublane) dim
    # in-kernel: VPU/XLU work, free under the HBM-bound roofline, and pe HBM
    # traffic stays S*D instead of S*B*D.
    o_ref[...] = x_ref[...] + pe_ref[...][:, None, :]


def _add_rowmajor_kernel(x_ref, pe_ref, o_ref, *, batch, d_model):
    # x/o: (ts, B*D); pe: (ts, D).  Static per-batch chunk add keeps everything
    # lane- and sublane-dense without materializing a (ts, B*D) pe temporary.
    pe = pe_ref[...]
    for b in range(batch):
        sl = slice(b * d_model, (b + 1) * d_model)
        o_ref[:, sl] = x_ref[:, sl] + pe


# ----------------------------------------------------------------------------- buffer
def make_positional_encoding(d_model: int, max_len: int = 5000,
                             dtype=jnp.float32) -> jnp.ndarray:
    """(max_len, 1, d_model) pe buffer, exactly as the PyTorch __init__.
    Built once in the model dtype so no per-call cast is needed."""
    if d_model % 2 != 0:
        # PyTorch's __init__ also fails for odd d_model (pe[:, 1::2] shape mismatch).
        raise ValueError("d_model must be even (PyTorch PositionalEncoding requires it)")
    position = jnp.arange(0, max_len, dtype=jnp.float32)[:, None]             # (max_len, 1)
    div_term = jnp.exp(
        jnp.arange(0, d_model, 2, dtype=jnp.float32) * (-math.log(10000.0) / d_model)
    )                                                                          # (d_model/2,)
    angles = position * div_term                                               # (max_len, d/2)
    pe = jnp.zeros((max_len, d_model), dtype=jnp.float32)
    pe = pe.at[:, 0::2].set(jnp.sin(angles))
    pe = pe.at[:, 1::2].set(jnp.cos(angles))
    return pe[:, None, :].astype(dtype)                                        # (max_len, 1, d)


# ----------------------------------------------------------------------------- wrapper
def _call_2d(kernel, x2, pe2, padded_bytes_per_row, sub, alias, params):
    rows, xc = x2.shape
    tr = _pick_row_tile(rows, padded_bytes_per_row, sub)
    return pl.pallas_call(
        kernel,
        out_shape=jax.ShapeDtypeStruct(x2.shape, x2.dtype),
        grid=(pl.cdiv(rows, tr),),
        in_specs=[
            pl.BlockSpec((tr, xc), lambda i: (i, 0)),
            pl.BlockSpec((tr, pe2.shape[1]), lambda i: (i, 0)),
        ],
        out_specs=pl.BlockSpec((tr, xc), lambda i: (i, 0)),
        input_output_aliases=alias,
        compiler_params=params,
    )(x2, pe2)


def positional_encoding_forward(x: jnp.ndarray, pe: jnp.ndarray,
                                *, donate_x: bool = False) -> jnp.ndarray:
    """x: (S, B, D).  pe: (max_len, 1, D).  Returns x + pe[:S] (eval-mode dropout).

    donate_x=True adds input_output_aliases={0: 0}; only use it when the caller
    no longer needs x after this call.
    """
    S, B, D = x.shape
    if S > pe.shape[0]:
        raise ValueError(f"sequence length {S} exceeds pe max_len {pe.shape[0]}")
    if pe.dtype != x.dtype:
        # Normally hoisted: build pe in the model dtype via make_positional_encoding.
        pe = pe.astype(x.dtype)
    pe2 = pe[:S, 0, :]                                     # (S, D), static slice

    itemsize = jnp.dtype(x.dtype).itemsize
    sub = _sublane_tile(x.dtype)
    params = pltpu.CompilerParams(
        dimension_semantics=("parallel",),
        vmem_limit_bytes=_VMEM_LIMIT_BYTES,
    )
    alias = {0: 0} if donate_x else {}

    if D % _LANE == 0:
        if B == 1:
            # Inference layout: dense (S, D) add, sublane dim = seq tile.
            per_row = 3 * D * itemsize * 2                                     # x + pe + out, x2 buffers
            out = _call_2d(_add_kernel, x.reshape(S, D), pe2, per_row, sub, alias, params)
            return out.reshape(S, 1, D)

        if B % sub != 0 and B <= _MAX_UNROLL_BATCH:
            # Small / non-tile-multiple batch: contiguous view (S, B*D) keeps the
            # block sublane dim = seq tile (no 8x-per-slab padding, unmasked stores).
            per_row = (2 * B * D + D) * itemsize * 2
            kern = functools.partial(_add_rowmajor_kernel, batch=B, d_model=D)
            out = _call_2d(kern, x.reshape(S, B * D), pe2, per_row, sub, alias, params)
            return out.reshape(S, B, D)

        # Batch fills sublane tiles (or too large to unroll): 3-D blocks, pe kept
        # 2-D and broadcast over batch inside the kernel.  Padding-aware footprint:
        # each (B, D) slab of x/out occupies round_up(B, sub) sublanes.
        per_row = (2 * _round_up(B, sub) * D + D) * itemsize * 2
        ts = _pick_row_tile(S, per_row, sub)
        return pl.pallas_call(
            _add_bcast_sublane_kernel,
            out_shape=jax.ShapeDtypeStruct((S, B, D), x.dtype),
            grid=(pl.cdiv(S, ts),),
            in_specs=[
                pl.BlockSpec((ts, B, D), lambda i: (i, 0, 0)),
                pl.BlockSpec((ts, D), lambda i: (i, 0)),
            ],
            out_specs=pl.BlockSpec((ts, B, D), lambda i: (i, 0, 0)),
            input_output_aliases=alias,
            compiler_params=params,
        )(x, pe2)

    # Fallback (d_model not a multiple of 128, e.g. toy demos): flatten the whole
    # problem to a lane-dense (rows, 128) slab (tail-padded) so every store is an
    # unmasked full-lane vst.  pe is pre-broadcast over batch here (extra S*B*D
    # pe traffic) -- acceptable only because this path is for small d_model.
    total = S * B * D
    pad = (-total) % _LANE
    xf = x.reshape(-1)
    pef = jnp.broadcast_to(pe2[:, None, :], (S, B, D)).reshape(-1)
    if pad:
        xf = jnp.pad(xf, (0, pad))
        pef = jnp.pad(pef, (0, pad))
    rows = (total + pad) // _LANE
    per_row = 3 * _LANE * itemsize * 2
    out2 = _call_2d(_add_kernel, xf.reshape(rows, _LANE), pef.reshape(rows, _LANE),
                    per_row, sub, alias, params)
    return out2.reshape(-1)[:total].reshape(S, B, D)


# ----------------------------------------------------------------------------- demo
if __name__ == "__main__":
    key = jax.random.PRNGKey(0)
    k1, k2, k3, k4, k5 = jax.random.split(key, 5)

    # --- Case 1: toy shape, d_model=32 -> flattened lane-dense fallback path ---
    d_model, max_len, seq_len, batch = 32, 64, 8, 2
    pe_small = make_positional_encoding(d_model, max_len)
    x1 = jax.random.normal(k1, (seq_len, batch, d_model), dtype=jnp.float32)
    out1 = jax.block_until_ready(positional_encoding_forward(x1, pe_small))
    ref1 = x1 + pe_small[:seq_len]
    assert out1.shape == x1.shape and jnp.allclose(out1, ref1, atol=1e-6), "fallback path mismatch"

    # --- Case 2: fallback path with tail padding (total elems % 128 != 0) ---
    x2 = jax.random.normal(k2, (7, 3, d_model), dtype=jnp.float32)
    out2 = jax.block_until_ready(positional_encoding_forward(x2, pe_small))
    ref2 = x2 + pe_small[:7]
    assert out2.shape == x2.shape and jnp.allclose(out2, ref2, atol=1e-6), "padded fallback mismatch"

    # --- Case 3: lane-dense d_model, B == 1 (inference) -> squeezed 2-D path ---
    d_model2, max_len2 = 128, 32
    pe_wide = make_positional_encoding(d_model2, max_len2)
    x3 = jax.random.normal(k3, (16, 1, d_model2), dtype=jnp.float32)
    out3 = jax.block_until_ready(positional_encoding_forward(x3, pe_wide))
    ref3 = x3 + pe_wide[:16]
    assert out3.shape == x3.shape and jnp.allclose(out3, ref3, atol=1e-6), "B==1 path mismatch"

    # --- Case 4: lane-dense d_model, small batch (1 < B < sublane tile) -> row-major path ---
    x4 = jax.random.normal(k4, (16, 2, d_model2), dtype=jnp.float32)
    out4 = jax.block_until_ready(positional_encoding_forward(x4, pe_wide))
    ref4 = x4 + pe_wide[:16]
    assert out4.shape == x4.shape and jnp.allclose(out4, ref4, atol=1e-6), "row-major path mismatch"

    # --- Case 5: lane-dense d_model, B multiple of sublane tile -> 3-D path, donated x ---
    x5 = jax.random.normal(k5, (16, 8, d_model2), dtype=jnp.float32)
    ref5 = jax.block_until_ready(x5 + pe_wide[:16])   # materialize ref before donating x5
    out5 = jax.block_until_ready(positional_encoding_forward(x5, pe_wide, donate_x=True))
    assert out5.shape == (16, 8, d_model2) and jnp.allclose(out5, ref5, atol=1e-6), "3-D path mismatch"

    print("KERNEL_OK")
</pallas_src>

<mosaic_0001>
module attributes {stable_mosaic.version = 11 : i64} {
  func.func @_add_kernel(%arg0: i32, %arg1: memref<4x128xf32, #tpu.memory_space<vmem>>, %arg2: memref<4x128xf32, #tpu.memory_space<vmem>>, %arg3: memref<4x128xf32, #tpu.memory_space<vmem>>) attributes {dimension_semantics = [#tpu.dimension_semantics<parallel>], iteration_bounds = array<i64: 1>, scalar_prefetch = 0 : i64, scratch_operands = 0 : i64, tpu.core_type = #tpu.core_type<tc>, window_params = [{transform_indices = @transform_0, window_bounds = array<i64: 4, 128>}, {transform_indices = @transform_1, window_bounds = array<i64: 4, 128>}, {transform_indices = @transform_2, window_bounds = array<i64: 4, 128>}]} {
    %c0 = arith.constant 0 : index
    %c0_0 = arith.constant 0 : index
    %0 = vector.load %arg1[%c0, %c0_0] : memref<4x128xf32, #tpu.memory_space<vmem>>, vector<4x128xf32>
    %c0_1 = arith.constant 0 : index
    %c0_2 = arith.constant 0 : index
    %1 = vector.load %arg2[%c0_1, %c0_2] : memref<4x128xf32, #tpu.memory_space<vmem>>, vector<4x128xf32>
    %2 = arith.addf %0, %1 : vector<4x128xf32>
    %c0_3 = arith.constant 0 : index
    %c0_4 = arith.constant 0 : index
    %3 = vector.load %arg3[%c0_3, %c0_4] : memref<4x128xf32, #tpu.memory_space<vmem>>, vector<4x128xf32>
    tpu.vector_store %arg3[%c0_3, %c0_4], %2 {strides = array<i32>} : memref<4x128xf32, #tpu.memory_space<vmem>>, vector<4x128xf32>,
    return
  }
  func.func @transform_0(%arg0: i32) -> (i32, i32) {
    %c0_i32 = arith.constant 0 : i32
    %c0_i32_0 = arith.constant 0 : i32
    return %arg0, %c0_i32 : i32, i32
  }
  func.func @transform_1(%arg0: i32) -> (i32, i32) {
    %c0_i32 = arith.constant 0 : i32
    %c0_i32_0 = arith.constant 0 : i32
    return %arg0, %c0_i32 : i32, i32
  }
  func.func @transform_2(%arg0: i32) -> (i32, i32) {
    %c0_i32 = arith.constant 0 : i32
    %c0_i32_0 = arith.constant 0 : i32
    return %arg0, %c0_i32 : i32, i32
  }
}

</mosaic_0001>

<llo_original>
// kernel: tpu_custom_call.1
$region0: #{tpu_custom_call.1}
  #allocation0 [shape = 'u32[]', space=smem, size = 0x4, offset = 0x4, fixed_abs, tag = 'smem constant byte address 0x4 - core index']
  #allocation1 [shape = 'u32[144,128]{1,0:T(1,128)}', space=vmem, size = 0x12000, scoped, tag = 'internal scratch']
  %s0 = inlined_call_operand.hbm [shape: f32[4,128], index: 0, kind: input, shape index: {}]
  %s1 = inlined_call_operand.hbm [shape: f32[4,128], index: 1, kind: input, shape index: {}]
  %s2 = inlined_call_operand.hbm [shape: f32[4,128], index: 2, kind: output, shape index: {}]
  %s3 = sld [smem:[#allocation0]]
  $region26: #{tpu_custom_call.1} parent=0
    _
  %s5 = ssub.s32 1, %s3
  %s6 = scalar_select 0, %s5, %s3
  $region1: #{tpu_custom_call.1} parent=0
    #allocation2 [shape = 'u8[2048]{0}', space=vmem, size = 0x800, scoped, tag = 'input window, operand 0, single buffered']
    #allocation3 [shape = 's32[1]{0}', space=sflag, size = 0x4, scoped, tag = 'scoped memory for tpu_custom_call.1']
    #allocation4 [shape = 's32[1]{0}', space=sflag, size = 0x4, scoped, tag = 'scoped memory for tpu_custom_call.1']
    #allocation5 [shape = 'u8[2048]{0}', space=vmem, size = 0x800, scoped, tag = 'input window, operand 1, single buffered']
    #allocation6 [shape = 's32[1]{0}', space=sflag, size = 0x4, scoped, tag = 'scoped memory for tpu_custom_call.1']
    #allocation7 [shape = 'u8[2048]{0}', space=vmem, size = 0x800, scoped, tag = 'output window, operand 0, single buffered']
    %7 = vsyncpa [#allocation3], 0
    %8 = vsyncpa [#allocation6], 0
    %9 = vsyncpa [#allocation4], 0
    // Predicated region
    $region2: #{tpu_custom_call.1} parent=1 // pred_check
      _
    $region3: #{tpu_custom_call.1} parent=1 // pred_check_branch
      %11 = sbr.rel (0) target = $region5
    $region4: #{tpu_custom_call.1} parent=1 // pred_region
      %s13 = ssub.s32 64, 64
      %14 = vsyncadd [#allocation3], %s13
      %s16 = sshll.u32 [#allocation2], 4
      %s17 = int_to_ptr.vmem [resolvable:$true] %s16
      %19 = dma.hbm_to_vmem [thread:$0]  %s0, 64, %s17, [#allocation3]
    $region5: #{tpu_custom_call.1} parent=1 // pred_fallthru
      _
    // Predicated region
    $region6: #{tpu_custom_call.1} parent=1 // pred_check
      _
    $region7: #{tpu_custom_call.1} parent=1 // pred_check_branch
      %21 = sbr.rel (0) target = $region9
    $region8: #{tpu_custom_call.1} parent=1 // pred_region
      %s23 = ssub.s32 64, 64
      %24 = vsyncadd [#allocation6], %s23
      %s26 = sshll.u32 [#allocation5], 4
      %s27 = int_to_ptr.vmem [resolvable:$true] %s26
      %29 = dma.hbm_to_vmem [thread:$0]  %s1, 64, %s27, [#allocation6]
    $region9: #{tpu_custom_call.1} parent=1 // pred_fallthru
      _
    // Predicated region
    $region10: #{tpu_custom_call.1} parent=1 // pred_check
      _
    $region11: #{tpu_custom_call.1} parent=1 // pred_check_branch
      %31 = sbr.rel (0) target = $region13
    $region12: #{tpu_custom_call.1} parent=1 // pred_region
      %32 = dma.done [#allocation3], 64
    $region13: #{tpu_custom_call.1} parent=1 // pred_fallthru
      _
    // Predicated region
    $region14: #{tpu_custom_call.1} parent=1 // pred_check
      _
    $region15: #{tpu_custom_call.1} parent=1 // pred_check_branch
      %34 = sbr.rel (0) target = $region17
    $region16: #{tpu_custom_call.1} parent=1 // pred_region
      %35 = dma.done [#allocation6], 64
    $region17: #{tpu_custom_call.1} parent=1 // pred_fallthru
      _
    %v36 = vld [vmem:[#allocation2] sm:$0xf]
    %v37 = vld [vmem:[#allocation5] sm:$0xf]
    %v38 = vadd.f32 %v36, %v37
    %39 = vst [vmem:[#allocation7] sm:$0xf] %v38
    // Predicated region
    $region18: #{tpu_custom_call.1} parent=1 // pred_check
      _
    $region19: #{tpu_custom_call.1} parent=1 // pred_check_branch
      %41 = sbr.rel (0) target = $region21
    $region20: #{tpu_custom_call.1} parent=1 // pred_region
      %s43 = ssub.s32 64, 64
      %44 = vsyncadd [#allocation4], %s43
      %s46 = sshll.u32 [#allocation7], 4
      %s47 = int_to_ptr.vmem [resolvable:$true] %s46
      %49 = dma.vmem_to_hbm [thread:$0]  %s47, 64, %s2, [#allocation4]
    $region21: #{tpu_custom_call.1} parent=1 // pred_fallthru
      _
    // Predicated region
    $region22: #{tpu_custom_call.1} parent=1 // pred_check
      _
    $region23: #{tpu_custom_call.1} parent=1 // pred_check_branch
      %51 = sbr.rel (0) target = $region25
    $region24: #{tpu_custom_call.1} parent=1 // pred_region
      %52 = dma.done [#allocation4], 64
    $region25: #{tpu_custom_call.1} parent=1 // pred_fallthru
      _
    %53 = vsyncpa [#allocation3], 1
    %54 = vsyncpa [#allocation6], 1
    %55 = vsyncpa [#allocation4], 1

</llo_original>
